<compile_context>
chip_gen: v7x
topology: tpu7x:2x2x1
jax: 0.10.0
libtpu: 0.0.40
codegen_flags: <defaults>
</compile_context>

<pallas_src>
import functools

import jax
import jax.numpy as jnp
from jax.experimental import pallas as pl
from jax.experimental.pallas import tpu as pltpu


_NEG_BIG = -1e30          # mask value for preds (exp underflows to 0)
_MAX_TC = 2048            # class tile (lane axis) for large C
_MAX_TM = 8192            # row tile cap


def _round_up(x, m):
    return ((x + m - 1) // m) * m


def _vmem_capacity_bytes():
    """Per-core VMEM capacity; conservative (v7x) fallback if the query fails."""
    try:
        cap = getattr(pltpu.get_tpu_info(), "vmem_capacity_bytes", None)
        if cap:
            return int(cap)
    except Exception:
        pass
    return 64 * 1024 * 1024


def _choose_tiles(N, C, in_bytes, max_itemsize, vmem_budget, target_block_bytes):
    """Pick (tm, tc): class tile first, then the largest safe row tile."""
    tc = C if C <= _MAX_TC else _MAX_TC
    tc_lane = _round_up(tc, 128)          # lane padding of a (tm, tc) block

    # Per-row VMEM of one grid step:
    #   pipeline: 2 inputs x 2 buffers in their HBM dtype
    #   compute : ~5 materialized f32 block temps (x, t, x-m, exp, t*x / mask)
    #   state   : fused (tm, 4) f32 accumulator, lane-padded to 128
    #   output  : (1, tm) f32 double-buffer (sublane-padded)
    per_row = (2 * tc_lane * in_bytes
               + 5 * tc_lane * 4
               + 128 * 4
               + 2 * 8 * 4)
    budget = max(vmem_budget - (2 << 20), per_row * 128)   # flat reserve
    tm_cap = budget // per_row
    tm_cap = min(tm_cap, _MAX_TM,
                 max(128, target_block_bytes // (tc_lane * max_itemsize)))
    tm_cap = max(128, (tm_cap // 128) * 128)

    tm = min(tm_cap, _round_up(N, 128))
    if N > 128 and pl.cdiv(N, tm) < 2:
        # >= 2 row tiles so the "parallel" row axis shards across both
        # TensorCores on v7x; costs only one extra ~0.35us step elsewhere.
        tm = min(tm, max(128, _round_up(pl.cdiv(N, 2), 128)))
    if N < tm:
        tm = _round_up(N, 8)              # tiny-N: shrink the row block to ~N
    return tm, tc


def _store_lane_dense(loss_ref, loss_col):
    """Relayout a (tm, 1) loss column into the (1, tm) lane-dense output block.

    Done in chunks (broadcast + (8,128)-aligned transpose on the idle XLU) so
    the relayout temps stay <= ~0.5 MiB regardless of tm.
    """
    tm = loss_col.shape[0]
    chunk = 512
    while tm % chunk:
        chunk //= 2
    for k in range(tm // chunk):
        col = loss_col[k * chunk:(k + 1) * chunk, :]          # (chunk, 1)
        mat = jnp.broadcast_to(col, (chunk, 128))             # (chunk, 128)
        row = jnp.transpose(mat, (1, 0))[0:1, :]              # (1, chunk)
        loss_ref[:, k * chunk:(k + 1) * chunk] = row.astype(loss_ref.dtype)


def _ce_loss_kernel(preds_ref, targets_ref, loss_ref, *scratch,
                    num_classes, class_tile, multi_step, mask_cols):
    """Grid = (row_tiles, class_tiles); the class axis (last) is the reduction."""
    j = pl.program_id(1)

    # Inputs stay in their HBM dtype inside the pipeline buffers; compute in
    # f32 (exp stability, v5e has no bf16 VPU, strict parity with reference).
    x = preds_ref[...].astype(jnp.float32)        # (tm, tc)
    t = targets_ref[...].astype(jnp.float32)      # (tm, tc)

    if mask_cols:
        # Ragged last class tile: mask padded lanes instead of padding in HBM.
        col = jax.lax.broadcasted_iota(jnp.int32, x.shape, 1) + j * class_tile
        valid = col < num_classes
        x = jnp.where(valid, x, _NEG_BIG)
        t = jnp.where(valid, t, 0.0)

    x_max = jnp.max(x, axis=-1, keepdims=True)                 # (tm, 1)
    tx = jnp.sum(t * x, axis=-1, keepdims=True)                # (tm, 1)
    ts = jnp.sum(t, axis=-1, keepdims=True)                    # (tm, 1)

    if not multi_step:
        # Single class step: direct logsumexp, no accumulator / rescale.
        lse = x_max + jnp.log(jnp.sum(jnp.exp(x - x_max), axis=-1, keepdims=True))
        _store_lane_dense(loss_ref, ts * lse - tx)
        return

    acc_ref, = scratch    # fused (tm, 4) f32: lanes = [m, l, sum(t*x), sum(t)]

    @pl.when(j == 0)
    def _init():
        lane = jax.lax.broadcasted_iota(jnp.int32, acc_ref.shape, 1)
        acc_ref[...] = jnp.where(lane == 0, -jnp.inf, 0.0).astype(jnp.float32)

    acc = acc_ref[...]                                          # (tm, 4)
    m_prev = acc[:, 0:1]
    l_prev = acc[:, 1:2]
    tx_prev = acc[:, 2:3]
    ts_prev = acc[:, 3:4]

    # Online logsumexp over the class axis.
    m_new = jnp.maximum(m_prev, x_max)
    alpha = jnp.exp(m_prev - m_new)
    l_new = alpha * l_prev + jnp.sum(jnp.exp(x - m_new), axis=-1, keepdims=True)

    lane4 = jax.lax.broadcasted_iota(jnp.int32, acc_ref.shape, 1)
    acc_ref[...] = jnp.where(
        lane4 == 0, m_new,
        jnp.where(lane4 == 1, l_new,
                  jnp.where(lane4 == 2, tx_prev + tx, ts_prev + ts)))

    @pl.when(j == pl.num_programs(1) - 1)
    def _finalize():
        accf = acc_ref[...]
        # loss = -sum(t * (x - lse)) = sum(t) * lse - sum(t * x)
        lse = accf[:, 0:1] + jnp.log(accf[:, 1:2])
        _store_lane_dense(loss_ref, accf[:, 3:4] * lse - accf[:, 2:3])


@functools.partial(jax.jit, static_argnames=("reduction",))
def ce_loss(preds, targets, reduction=None):
    """Pallas implementation of CELoss.forward."""
    orig_shape = preds.shape
    C = orig_shape[-1]
    lead_shape = orig_shape[:-1]
    N = 1
    for d in lead_shape:
        N *= d

    out_dtype = jnp.result_type(preds.dtype, targets.dtype)
    preds2d = preds.reshape(N, C)
    targets2d = targets.reshape(N, C)

    vmem_cap = _vmem_capacity_bytes()
    vmem_limit = max(32 << 20, min(vmem_cap - (8 << 20), int(vmem_cap * 0.85)))
    # ~8 MiB/input tiles where VMEM allows (v5e/v6e 128 MiB), tighter on v7x.
    target_block = (8 << 20) if vmem_cap >= (96 << 20) else (6 << 20)

    tm, tc = _choose_tiles(
        N, C,
        in_bytes=preds2d.dtype.itemsize + targets2d.dtype.itemsize,
        max_itemsize=max(preds2d.dtype.itemsize, targets2d.dtype.itemsize),
        vmem_budget=(int(vmem_limit) * 3) // 4,
        target_block_bytes=target_block,
    )

    g_rows = pl.cdiv(N, tm)
    g_cls = pl.cdiv(C, tc)
    multi_step = g_cls > 1
    mask_cols = (C % tc) != 0

    kernel = functools.partial(
        _ce_loss_kernel,
        num_classes=C, class_tile=tc,
        multi_step=multi_step, mask_cols=mask_cols)

    scratch_shapes = [pltpu.VMEM((tm, 4), jnp.float32)] if multi_step else []

    loss_tiles = pl.pallas_call(
        kernel,
        out_shape=jax.ShapeDtypeStruct((g_rows, tm), jnp.float32),
        grid_spec=pltpu.PrefetchScalarGridSpec(
            num_scalar_prefetch=0,
            grid=(g_rows, g_cls),
            in_specs=[
                pl.BlockSpec((tm, tc), lambda i, j: (i, j)),
                pl.BlockSpec((tm, tc), lambda i, j: (i, j)),
            ],
            # Same output block across the class axis -> resident block,
            # written once on the last class step.
            out_specs=pl.BlockSpec((1, tm), lambda i, j: (i, 0)),
            scratch_shapes=scratch_shapes,
        ),
        compiler_params=pltpu.CompilerParams(
            dimension_semantics=("parallel", "arbitrary"),
            vmem_limit_bytes=int(vmem_limit),
        ),
    )(preds2d, targets2d)

    loss = loss_tiles.reshape(g_rows * tm)[:N].reshape(lead_shape).astype(out_dtype)
    if reduction == "mean":
        return jnp.mean(loss)
    return loss


if __name__ == "__main__":
    key = jax.random.PRNGKey(0)
    k1, k2, k3, k4, k5, k6 = jax.random.split(key, 6)

    # Image-text matching style: batch of 8 queries over 32 candidates.
    B, C = 8, 32
    preds = jax.random.normal(k1, (B, C), dtype=jnp.float32)
    targets = jax.nn.softmax(
        jax.random.normal(k2, (B, C), dtype=jnp.float32), axis=-1)

    loss = ce_loss(preds, targets)                      # per-sample, shape (B,)
    loss_mean = ce_loss(preds, targets, reduction="mean")

    # Higher-rank, ragged-N case (exercises flatten + ragged row tile): (2,5,32).
    preds3 = jax.random.normal(k3, (2, 5, C), dtype=jnp.float32)
    targets3 = jax.nn.softmax(
        jax.random.normal(k4, (2, 5, C), dtype=jnp.float32), axis=-1)
    loss3 = ce_loss(preds3, targets3)

    # Large-C case (exercises the multi-class-step online logsumexp + the
    # in-kernel ragged class-tile masking): C = 4100 > class tile of 2048.
    Cw = 4100
    predsw = jax.random.normal(k5, (B, Cw), dtype=jnp.float32)
    targetsw = jax.nn.softmax(
        jax.random.normal(k6, (B, Cw), dtype=jnp.float32), axis=-1)
    lossw = ce_loss(predsw, targetsw)

    jax.block_until_ready((loss, loss_mean, loss3, lossw))

    # Reference check against plain-JAX semantics of the PyTorch module.
    ref = jnp.sum(-targets * jax.nn.log_softmax(preds, axis=-1), axis=-1)
    ref3 = jnp.sum(-targets3 * jax.nn.log_softmax(preds3, axis=-1), axis=-1)
    refw = jnp.sum(-targetsw * jax.nn.log_softmax(predsw, axis=-1), axis=-1)
    assert loss.shape == (B,)
    assert loss3.shape == (2, 5)
    assert lossw.shape == (B,)
    assert jnp.allclose(loss, ref, atol=1e-5, rtol=1e-5)
    assert jnp.allclose(loss_mean, jnp.mean(ref), atol=1e-5, rtol=1e-5)
    assert jnp.allclose(loss3, ref3, atol=1e-5, rtol=1e-5)
    assert jnp.allclose(lossw, refw, atol=1e-5, rtol=1e-5)

    print("KERNEL_OK")
</pallas_src>

<mosaic_0001>
module attributes {stable_mosaic.version = 11 : i64} {
  func.func @_ce_loss_kernel(%arg0: i32, %arg1: i32, %arg2: memref<8x32xf32, #tpu.memory_space<vmem>>, %arg3: memref<8x32xf32, #tpu.memory_space<vmem>>, %arg4: memref<1x8xf32, #tpu.memory_space<vmem>>) attributes {dimension_semantics = [#tpu.dimension_semantics<parallel>, #tpu.dimension_semantics<arbitrary>], iteration_bounds = array<i64: 1, 1>, scalar_prefetch = 0 : i64, scratch_operands = 0 : i64, tpu.core_type = #tpu.core_type<tc>, window_params = [{transform_indices = @transform_0, window_bounds = array<i64: 8, 32>}, {transform_indices = @transform_1, window_bounds = array<i64: 8, 32>}, {transform_indices = @transform_2, window_bounds = array<i64: 1, 8>}]} {
    %c0 = arith.constant 0 : index
    %c0_0 = arith.constant 0 : index
    %0 = vector.load %arg2[%c0, %c0_0] : memref<8x32xf32, #tpu.memory_space<vmem>>, vector<8x32xf32>
    %c0_1 = arith.constant 0 : index
    %c0_2 = arith.constant 0 : index
    %1 = vector.load %arg3[%c0_1, %c0_2] : memref<8x32xf32, #tpu.memory_space<vmem>>, vector<8x32xf32>
    %cst = arith.constant dense<0xFF800000> : vector<8xf32>
    %2 = vector.multi_reduction <maximumf>, %0, %cst [1] : vector<8x32xf32> to vector<8xf32>
    %3 = vector.shape_cast %2 : vector<8xf32> to vector<8x1xf32>
    %4 = arith.mulf %1, %0 : vector<8x32xf32>
    %cst_3 = arith.constant dense<0.000000e+00> : vector<8xf32>
    %5 = vector.multi_reduction <add>, %4, %cst_3 [1] : vector<8x32xf32> to vector<8xf32>
    %6 = vector.shape_cast %5 : vector<8xf32> to vector<8x1xf32>
    %cst_4 = arith.constant dense<0.000000e+00> : vector<8xf32>
    %7 = vector.multi_reduction <add>, %1, %cst_4 [1] : vector<8x32xf32> to vector<8xf32>
    %8 = vector.shape_cast %7 : vector<8xf32> to vector<8x1xf32>
    %9 = vector.broadcast %3 : vector<8x1xf32> to vector<8x32xf32>
    %10 = arith.subf %0, %9 : vector<8x32xf32>
    %11 = math.exp %10 : vector<8x32xf32>
    %cst_5 = arith.constant dense<0.000000e+00> : vector<8xf32>
    %12 = vector.multi_reduction <add>, %11, %cst_5 [1] : vector<8x32xf32> to vector<8xf32>
    %13 = vector.shape_cast %12 : vector<8xf32> to vector<8x1xf32>
    %14 = math.log %13 : vector<8x1xf32>
    %15 = arith.addf %3, %14 : vector<8x1xf32>
    %16 = arith.mulf %8, %15 : vector<8x1xf32>
    %17 = arith.subf %16, %6 : vector<8x1xf32>
    %18 = vector.shape_cast %17 : vector<8x1xf32> to vector<8x1xf32>
    %19 = vector.broadcast %18 : vector<8x1xf32> to vector<8x128xf32>
    %20 = tpu.transpose %19, [1, 0] : vector<8x128xf32> -> vector<128x8xf32>
    %21 = vector.extract_strided_slice %20 {offsets = [0, 0], sizes = [1, 8], strides = [1, 1]} : vector<128x8xf32> to vector<1x8xf32>
    %c0_6 = arith.constant 0 : index
    %c0_7 = arith.constant 0 : index
    %22 = vector.load %arg4[%c0_6, %c0_7] : memref<1x8xf32, #tpu.memory_space<vmem>>, vector<1x8xf32>
    tpu.vector_store %arg4[%c0_6, %c0_7], %21 {strides = array<i32>} : memref<1x8xf32, #tpu.memory_space<vmem>>, vector<1x8xf32>,
    return
  }
  func.func @transform_0(%arg0: i32, %arg1: i32) -> (i32, i32) {
    %c0_i32 = arith.constant 0 : i32
    return %arg0, %arg1 : i32, i32
  }
  func.func @transform_1(%arg0: i32, %arg1: i32) -> (i32, i32) {
    %c0_i32 = arith.constant 0 : i32
    return %arg0, %arg1 : i32, i32
  }
  func.func @transform_2(%arg0: i32, %arg1: i32) -> (i32, i32) {
    %c0_i32 = arith.constant 0 : i32
    %c0_i32_0 = arith.constant 0 : i32
    return %arg0, %c0_i32 : i32, i32
  }
}

</mosaic_0001>

<llo_original>
// kernel: ce_loss.1
$region0: #{ce_loss.1}
  #allocation0 [shape = 'u32[]', space=smem, size = 0x4, offset = 0x4, fixed_abs, tag = 'smem constant byte address 0x4 - core index']
  #allocation1 [shape = 'u32[144,128]{1,0:T(1,128)}', space=vmem, size = 0x12000, scoped, tag = 'internal scratch']
  %s0 = inlined_call_operand.hbm [shape: f32[8,32], index: 0, kind: input, shape index: {}]
  %s1 = inlined_call_operand.hbm [shape: f32[8,32], index: 1, kind: input, shape index: {}]
  %s2 = inlined_call_operand.hbm [shape: f32[1,8], index: 2, kind: output, shape index: {}]
  %s3 = sld [smem:[#allocation0]]
  $region26: #{ce_loss.1} parent=0
    _
  %s5 = ssub.s32 1, %s3
  %s6 = scalar_select 0, %s5, %s3
  $region1: #{ce_loss.1} parent=0
    #allocation2 [shape = 'u8[4096]{0}', space=vmem, size = 0x1000, scoped, tag = 'input window, operand 0, single buffered']
    #allocation3 [shape = 's32[1]{0}', space=sflag, size = 0x4, scoped, tag = 'scoped memory for ce_loss.1']
    #allocation4 [shape = 's32[1]{0}', space=sflag, size = 0x4, scoped, tag = 'scoped memory for ce_loss.1']
    #allocation5 [shape = 'u8[4096]{0}', space=vmem, size = 0x1000, scoped, tag = 'input window, operand 1, single buffered']
    #allocation6 [shape = 's32[1]{0}', space=sflag, size = 0x4, scoped, tag = 'scoped memory for ce_loss.1']
    #allocation7 [shape = 'u8[512]{0}', space=vmem, size = 0x400, scoped, tag = 'output window, operand 0, single buffered']
    %7 = vsyncpa [#allocation3], 0
    %8 = vsyncpa [#allocation6], 0
    %9 = vsyncpa [#allocation4], 0
    // Predicated region
    $region2: #{ce_loss.1} parent=1 // pred_check
      _
    $region3: #{ce_loss.1} parent=1 // pred_check_branch
      %11 = sbr.rel (0) target = $region5
    $region4: #{ce_loss.1} parent=1 // pred_region
      %s13 = ssub.s32 128, 128
      %14 = vsyncadd [#allocation3], %s13
      %s16 = sshll.u32 [#allocation2], 4
      %s17 = int_to_ptr.vmem [resolvable:$true] %s16
      %19 = dma.hbm_to_vmem [thread:$0]  %s0, 128, %s17, [#allocation3]
    $region5: #{ce_loss.1} parent=1 // pred_fallthru
      _
    // Predicated region
    $region6: #{ce_loss.1} parent=1 // pred_check
      _
    $region7: #{ce_loss.1} parent=1 // pred_check_branch
      %21 = sbr.rel (0) target = $region9
    $region8: #{ce_loss.1} parent=1 // pred_region
      %s23 = ssub.s32 128, 128
      %24 = vsyncadd [#allocation6], %s23
      %s26 = sshll.u32 [#allocation5], 4
      %s27 = int_to_ptr.vmem [resolvable:$true] %s26
      %29 = dma.hbm_to_vmem [thread:$0]  %s1, 128, %s27, [#allocation6]
    $region9: #{ce_loss.1} parent=1 // pred_fallthru
      _
    // Predicated region
    $region10: #{ce_loss.1} parent=1 // pred_check
      _
    $region11: #{ce_loss.1} parent=1 // pred_check_branch
      %31 = sbr.rel (0) target = $region13
    $region12: #{ce_loss.1} parent=1 // pred_region
      %32 = dma.done [#allocation3], 128
    $region13: #{ce_loss.1} parent=1 // pred_fallthru
      _
    // Predicated region
    $region14: #{ce_loss.1} parent=1 // pred_check
      _
    $region15: #{ce_loss.1} parent=1 // pred_check_branch
      %34 = sbr.rel (0) target = $region17
    $region16: #{ce_loss.1} parent=1 // pred_region
      %35 = dma.done [#allocation6], 128
    $region17: #{ce_loss.1} parent=1 // pred_fallthru
      _
    %v36 = vld [vmem:[#allocation2] sm:$0xff]
    %v37 = vld [vmem:[#allocation5] sm:$0xff]
    %vm38 = vcmask 261120
    %v39 = vsel %vm38, %v36, -inf
    %40 = vmax.xlane.f32.xlu0 %v39
    %v41 = vpop.xlane.xlu0 %40
    %v42 = vmul.f32 %v37, %v36
    %v43 = vsel %vm38, %v42, 0.0
    %44 = vadd.xlane.f32.xlu0 %v43
    %v45 = vpop.xlane.xlu0 %44
    %v46 = vsel %vm38, %v37, 0.0
    %47 = vadd.xlane.f32.xlu0 %v46
    %v48 = vpop.xlane.xlu0 %47
    %v49 = vsub.f32 %v36, %v41
    %v50 = vmul.f32 %v49, 1.442695
    %v51 = vpow.pop %v50
    %v52 = vsel %vm38, %v51, 0.0
    %53 = vadd.xlane.f32.xlu0 %v52
    %v54 = vpop.xlane.xlu0 %53
    %v55 = vlog2.pop %v54
    %v56 = vmul.f32 %v55, 0.6931472
    %v57 = vadd.f32 %v41, %v56
    %v58 = vmul.f32 %v48, %v57
    %v59 = vsub.f32 %v58, %v45
    %60 = vxpose.xlu0.b32.start [1/16] %v59, 128
    %61 = vxpose.xlu0.b32.cont [2/16] 0.0, 128
    %62 = vxpose.xlu0.b32.cont [3/16] 0.0, 128
    %63 = vxpose.xlu0.b32.cont [4/16] 0.0, 128
    %64 = vxpose.xlu0.b32.cont [5/16] 0.0, 128
    %65 = vxpose.xlu0.b32.cont [6/16] 0.0, 128
    %66 = vxpose.xlu0.b32.cont [7/16] 0.0, 128
    %67 = vxpose.xlu0.b32.cont [8/16] 0.0, 128
    %68 = vxpose.xlu0.b32.cont [9/16] 0.0, 128
    %69 = vxpose.xlu0.b32.cont [10/16] 0.0, 128
    %70 = vxpose.xlu0.b32.cont [11/16] 0.0, 128
    %71 = vxpose.xlu0.b32.cont [12/16] 0.0, 128
    %72 = vxpose.xlu0.b32.cont [13/16] 0.0, 128
    %73 = vxpose.xlu0.b32.cont [14/16] 0.0, 128
    %74 = vxpose.xlu0.b32.cont [15/16] 0.0, 128
    %75 = vxpose.xlu0.b32.end [16/16] 0.0, 128
    %v76 = vpop.trf.xlu0
    %v77 = vpop.trf.xlu0
    %v78 = vpop.trf.xlu0
    %v79 = vpop.trf.xlu0
    %v80 = vpop.trf.xlu0
    %v81 = vpop.trf.xlu0
    %v82 = vpop.trf.xlu0
    %v83 = vpop.trf.xlu0
    %v84 = vpop.trf.xlu0
    %v85 = vpop.trf.xlu0
    %v86 = vpop.trf.xlu0
    %v87 = vpop.trf.xlu0
    %v88 = vpop.trf.xlu0
    %v89 = vpop.trf.xlu0
    %v90 = vpop.trf.xlu0
    %v91 = vpop.trf.xlu0
    %vm92 = vcmask 57344
    %93 = vst.msk [vmem:[#allocation7] sm:$0x1] %vm92, %v76
    // Predicated region
    $region18: #{ce_loss.1} parent=1 // pred_check
      _
    $region19: #{ce_loss.1} parent=1 // pred_check_branch
      %95 = sbr.rel (0) target = $region21
    $region20: #{ce_loss.1} parent=1 // pred_region
      %s97 = ssub.s32 16, 16
      %98 = vsyncadd [#allocation4], %s97
      %s100 = sshll.u32 [#allocation7], 4
      %s101 = int_to_ptr.vmem [resolvable:$true] %s100
      %103 = dma.vmem_to_hbm [thread:$0]  %s101, 16, %s2, [#allocation4]
    $region21: #{ce_loss.1} parent=1 // pred_fallthru
      _
    // Predicated region
    $region22: #{ce_loss.1} parent=1 // pred_check
      _
    $region23: #{ce_loss.1} parent=1 // pred_check_branch
      %105 = sbr.rel (0) target = $region25
    $region24: #{ce_loss.1} parent=1 // pred_region
      %106 = dma.done [#allocation4], 16
    $region25: #{ce_loss.1} parent=1 // pred_fallthru
      _
    %107 = vsyncpa [#allocation3], 1
    %108 = vsyncpa [#allocation6], 1
    %109 = vsyncpa [#allocation4], 1

</llo_original>
